<compile_context>
chip_gen: v5e
topology: v5e:2x2
jax: 0.10.0
libtpu: 0.0.40
codegen_flags: <defaults>
</compile_context>

<pallas_src>
import math

import jax
import jax.numpy as jnp
import numpy as np
from jax.experimental import pallas as pl
from jax.experimental.pallas import tpu as pltpu

NEG_SLOPE = 0.01  # nn.LeakyReLU default negative_slope


# ---------------------------------------------------------------------------
# Mask construction (mirrors MaskedMLP.__init__ degree logic, plain JAX glue).
# ---------------------------------------------------------------------------
def build_masks(input_dims, output_dims, layers=3, nodes_per_feature=8):
    in_degrees = np.concatenate(
        [np.full(d, i, dtype=np.int32) for i, d in enumerate(input_dims)])
    hidden_degrees = np.repeat(np.arange(len(input_dims), dtype=np.int32),
                               nodes_per_feature)
    out_degrees = np.concatenate(
        [np.full(d, i, dtype=np.int32) for i, d in enumerate(output_dims)])
    hidden_layers = layers - 1
    layer_degrees = [in_degrees, *([hidden_degrees] * hidden_layers), out_degrees]
    masks = []
    for deg_in, deg_out in zip(layer_degrees[:-1], layer_degrees[1:]):
        masks.append(
            jnp.asarray((deg_out[:, None] >= deg_in[None, :]).astype(np.float32)))
    return masks


# ---------------------------------------------------------------------------
# Pallas kernel: fused L-layer masked MLP on row-grouped, lane-dense blocks.
# Each layer is  h = h @ W_bd + b_bd  (+ LeakyReLU for hidden layers),
# where W_bd is the block-diagonal pre-masked weight.
# ---------------------------------------------------------------------------
def _make_kernel(num_layers):
    def kernel(x_ref, *refs):
        o_ref = refs[-1]                                   # output block
        h = x_ref[...].astype(jnp.float32)                 # (bt_g, g*d_in)
        for li in range(num_layers):
            w_ref = refs[2 * li]
            b_ref = refs[2 * li + 1]
            h = jnp.dot(h, w_ref[...],
                        preferred_element_type=jnp.float32) + b_ref[...]
            if li < num_layers - 1:
                h = jnp.where(h > 0, h, NEG_SLOPE * h)     # LeakyReLU
        o_ref[...] = h.astype(o_ref.dtype)                 # (bt_g, g*d_out)
    return kernel


def _round_down(a, m):
    return (a // m) * m


def _round_up(a, m):
    return -(-a // m) * m


def masked_mlp_forward(x, weights, biases, masks, *, batch_tile=32768):
    """Fused MaskedMLP forward.  x: (B, d_in) -> (B, d_out)."""
    B, d_in = x.shape
    d_out = weights[-1].shape[0]
    num_layers = len(weights)

    # Row-group size: smallest g with (g * d_in) % 128 == 0, so the grouped
    # input view is lane-dense and (B, d_in) -> (B/g, g*d_in) is a free
    # row-major reshape (no transpose, no relayout, no extra HBM pass).
    g = 128 // math.gcd(128, d_in)

    # Rare small-tail pad so B is a multiple of g (rows are independent, so
    # the pad is semantically inert; production callers should pre-pad once).
    B_g = _round_up(B, g)
    if B_g != B:
        x = jnp.pad(x, ((0, B_g - B), (0, 0)))
    R = B_g // g                                  # grouped rows
    x_g = x.reshape(R, g * d_in)                  # free reshape, lane-dense

    # Grid-invariant parameter prep (tiny, done once): pre-masked transposed
    # block-diagonal weights + tiled biases, all resident in VMEM.
    eye_g = jnp.eye(g, dtype=jnp.float32)
    params = []
    dims_io = []
    for w, b, m in zip(weights, biases, masks):
        o_f, i_f = w.shape
        dims_io.append((i_f, o_f))
        wt = (m * w).T.astype(jnp.float32)                        # (in, out)
        params.append(jnp.kron(eye_g, wt))                        # (g*in, g*out)
        params.append(jnp.tile(b.astype(jnp.float32), g)[None, :])  # (1, g*out)

    # Batch tiling (in grouped rows).  Tiles are multiples of 8 grouped rows
    # (= multiple of 128 batch rows for d_in=8), big enough to amortize the
    # ~0.35us/step overhead, small enough for every generation's scoped VMEM,
    # and capped so large inputs get >=4 grid steps (v7x 2-TC sharding).
    bt_rows = max(128, _round_down(int(batch_tile), 128))
    bt_g = max(8, _round_down(max(bt_rows // g, 1), 8))
    if bt_g >= R:
        bt_g = R                                   # single full-extent block
    else:
        quarter = _round_up(pl.cdiv(R, 4), 8)
        if quarter >= 512:                         # keep tiles >= 512*g rows
            bt_g = min(bt_g, quarter)
    grid = (pl.cdiv(R, bt_g),)

    in_specs = [pl.BlockSpec((bt_g, g * d_in), lambda i: (i, 0))]
    for p in params:
        in_specs.append(pl.BlockSpec(p.shape, lambda i: (0, 0)))
    out_specs = pl.BlockSpec((bt_g, g * d_out), lambda i: (i, 0))

    param_bytes = sum(int(np.prod(p.shape)) * 4 for p in params)
    flops = 2 * R * sum((g * i_f) * (g * o_f) for i_f, o_f in dims_io)
    bytes_accessed = 4 * R * g * (d_in + d_out) + param_bytes

    out_g = pl.pallas_call(
        _make_kernel(num_layers),
        out_shape=jax.ShapeDtypeStruct((R, g * d_out), x.dtype),
        grid_spec=pl.GridSpec(grid=grid, in_specs=in_specs, out_specs=out_specs),
        compiler_params=pltpu.CompilerParams(
            dimension_semantics=("parallel",),
            vmem_limit_bytes=32 * 1024 * 1024),
        cost_estimate=pl.CostEstimate(
            flops=int(flops), transcendentals=0,
            bytes_accessed=int(bytes_accessed)),
    )(x_g, *params)

    out = out_g.reshape(B_g, d_out)               # free row-major reshape
    return out if B_g == B else out[:B]


# ---------------------------------------------------------------------------
# Plain-JAX reference (sanity check only).
# ---------------------------------------------------------------------------
def masked_mlp_reference(x, weights, biases, masks):
    h = x
    for w, b, m in zip(weights[:-1], biases[:-1], masks[:-1]):
        h = h @ (m * w).T + b
        h = jnp.where(h > 0, h, NEG_SLOPE * h)
    return h @ (masks[-1] * weights[-1]).T + biases[-1]


if __name__ == "__main__":
    # Module config (small): input_dims -> D_in=8, output_dims -> D_out=4,
    # layers=3, nodes_per_feature=8 -> hidden width = 3*8 = 24.
    input_dims = [2, 3, 3]
    output_dims = [1, 1, 2]
    layers = 3
    nodes_per_feature = 8

    masks = build_masks(input_dims, output_dims, layers, nodes_per_feature)

    # Deterministic parameter init matching the layer shapes of __init__.
    # NOTE: reset_parameters() zeroes the last layer (output would be all
    # zeros); we use a deterministic uniform init for every layer so the
    # kernel exercises non-trivial compute.  Masks are still applied exactly.
    key = jax.random.PRNGKey(0)
    weights, biases = [], []
    for m in masks:
        out_f, in_f = m.shape
        key, kw, kb = jax.random.split(key, 3)
        bound = 1.0 / math.sqrt(in_f)
        weights.append(jax.random.uniform(kw, (out_f, in_f), jnp.float32,
                                          -bound, bound))
        biases.append(jax.random.uniform(kb, (out_f,), jnp.float32,
                                         -bound, bound))

    d_in = sum(input_dims)

    # --- small demo batch (single tile) -----------------------------------
    B = 16
    key, kx = jax.random.split(key)
    x = jax.random.normal(kx, (B, d_in), jnp.float32)
    out = jax.block_until_ready(masked_mlp_forward(x, weights, biases, masks))
    ref = masked_mlp_reference(x, weights, biases, masks)
    np.testing.assert_allclose(np.asarray(out), np.asarray(ref),
                               rtol=1e-5, atol=1e-5)

    # --- ragged batch exercising grid > 1 and a partial tail block ---------
    B2 = 4100                                     # not a multiple of 16
    key, kx2 = jax.random.split(key)
    x2 = jax.random.normal(kx2, (B2, d_in), jnp.float32)
    out2 = jax.block_until_ready(
        masked_mlp_forward(x2, weights, biases, masks, batch_tile=2048))
    ref2 = masked_mlp_reference(x2, weights, biases, masks)
    np.testing.assert_allclose(np.asarray(out2), np.asarray(ref2),
                               rtol=1e-5, atol=1e-5)

    print("KERNEL_OK")
</pallas_src>

<mosaic_0001>
module attributes {stable_mosaic.version = 11 : i64} {
  func.func @kernel(%arg0: i32, %arg1: memref<1x128xf32, #tpu.memory_space<vmem>>, %arg2: memref<128x384xf32, #tpu.memory_space<vmem>>, %arg3: memref<1x384xf32, #tpu.memory_space<vmem>>, %arg4: memref<384x384xf32, #tpu.memory_space<vmem>>, %arg5: memref<1x384xf32, #tpu.memory_space<vmem>>, %arg6: memref<384x64xf32, #tpu.memory_space<vmem>>, %arg7: memref<1x64xf32, #tpu.memory_space<vmem>>, %arg8: memref<1x64xf32, #tpu.memory_space<vmem>>) attributes {dimension_semantics = [#tpu.dimension_semantics<parallel>], iteration_bounds = array<i64: 1>, scalar_prefetch = 0 : i64, scratch_operands = 0 : i64, tpu.core_type = #tpu.core_type<tc>, window_params = [{transform_indices = @transform_0, window_bounds = array<i64: 1, 128>}, {pipeline_mode = #tpu.pipeline_mode<synchronous>, transform_indices = @transform_1, window_bounds = array<i64: 128, 384>}, {pipeline_mode = #tpu.pipeline_mode<synchronous>, transform_indices = @transform_2, window_bounds = array<i64: 1, 384>}, {pipeline_mode = #tpu.pipeline_mode<synchronous>, transform_indices = @transform_3, window_bounds = array<i64: 384, 384>}, {pipeline_mode = #tpu.pipeline_mode<synchronous>, transform_indices = @transform_4, window_bounds = array<i64: 1, 384>}, {pipeline_mode = #tpu.pipeline_mode<synchronous>, transform_indices = @transform_5, window_bounds = array<i64: 384, 64>}, {pipeline_mode = #tpu.pipeline_mode<synchronous>, transform_indices = @transform_6, window_bounds = array<i64: 1, 64>}, {transform_indices = @transform_7, window_bounds = array<i64: 1, 64>}]} {
    %c0 = arith.constant 0 : index
    %c0_0 = arith.constant 0 : index
    %0 = vector.load %arg1[%c0, %c0_0] : memref<1x128xf32, #tpu.memory_space<vmem>>, vector<1x128xf32>
    %c0_1 = arith.constant 0 : index
    %c0_2 = arith.constant 0 : index
    %1 = vector.load %arg2[%c0_1, %c0_2] : memref<128x384xf32, #tpu.memory_space<vmem>>, vector<128x384xf32>
    %cst = arith.constant dense<0.000000e+00> : vector<1x384xf32>
    %2 = tpu.matmul %0, %1, %cst {dimension_numbers = #tpu.dot_dimension_numbers<[1], [0], [0], [1], [0, 0, 1, 1], [], []>} : vector<1x128xf32>, vector<128x384xf32>, vector<1x384xf32> -> vector<1x384xf32>
    %c0_3 = arith.constant 0 : index
    %c0_4 = arith.constant 0 : index
    %3 = vector.load %arg3[%c0_3, %c0_4] : memref<1x384xf32, #tpu.memory_space<vmem>>, vector<1x384xf32>
    %4 = arith.addf %2, %3 : vector<1x384xf32>
    %cst_5 = arith.constant 0.000000e+00 : f32
    %5 = vector.broadcast %cst_5 : f32 to vector<1x384xf32>
    %6 = arith.cmpf ogt, %4, %5 : vector<1x384xf32>
    %cst_6 = arith.constant 0.00999999977 : f32
    %7 = vector.broadcast %cst_6 : f32 to vector<1x384xf32>
    %8 = arith.mulf %7, %4 : vector<1x384xf32>
    %9 = arith.select %6, %4, %8 : vector<1x384xi1>, vector<1x384xf32>
    %c0_7 = arith.constant 0 : index
    %c0_8 = arith.constant 0 : index
    %10 = vector.load %arg4[%c0_7, %c0_8] : memref<384x384xf32, #tpu.memory_space<vmem>>, vector<384x384xf32>
    %cst_9 = arith.constant dense<0.000000e+00> : vector<1x384xf32>
    %11 = tpu.matmul %9, %10, %cst_9 {dimension_numbers = #tpu.dot_dimension_numbers<[1], [0], [0], [1], [0, 0, 1, 1], [], []>} : vector<1x384xf32>, vector<384x384xf32>, vector<1x384xf32> -> vector<1x384xf32>
    %c0_10 = arith.constant 0 : index
    %c0_11 = arith.constant 0 : index
    %12 = vector.load %arg5[%c0_10, %c0_11] : memref<1x384xf32, #tpu.memory_space<vmem>>, vector<1x384xf32>
    %13 = arith.addf %11, %12 : vector<1x384xf32>
    %cst_12 = arith.constant 0.000000e+00 : f32
    %14 = vector.broadcast %cst_12 : f32 to vector<1x384xf32>
    %15 = arith.cmpf ogt, %13, %14 : vector<1x384xf32>
    %cst_13 = arith.constant 0.00999999977 : f32
    %16 = vector.broadcast %cst_13 : f32 to vector<1x384xf32>
    %17 = arith.mulf %16, %13 : vector<1x384xf32>
    %18 = arith.select %15, %13, %17 : vector<1x384xi1>, vector<1x384xf32>
    %c0_14 = arith.constant 0 : index
    %c0_15 = arith.constant 0 : index
    %19 = vector.load %arg6[%c0_14, %c0_15] : memref<384x64xf32, #tpu.memory_space<vmem>>, vector<384x64xf32>
    %cst_16 = arith.constant dense<0.000000e+00> : vector<1x64xf32>
    %20 = tpu.matmul %18, %19, %cst_16 {dimension_numbers = #tpu.dot_dimension_numbers<[1], [0], [0], [1], [0, 0, 1, 1], [], []>} : vector<1x384xf32>, vector<384x64xf32>, vector<1x64xf32> -> vector<1x64xf32>
    %c0_17 = arith.constant 0 : index
    %c0_18 = arith.constant 0 : index
    %21 = vector.load %arg7[%c0_17, %c0_18] : memref<1x64xf32, #tpu.memory_space<vmem>>, vector<1x64xf32>
    %22 = arith.addf %20, %21 : vector<1x64xf32>
    %c0_19 = arith.constant 0 : index
    %c0_20 = arith.constant 0 : index
    %23 = vector.load %arg8[%c0_19, %c0_20] : memref<1x64xf32, #tpu.memory_space<vmem>>, vector<1x64xf32>
    tpu.vector_store %arg8[%c0_19, %c0_20], %22 {strides = array<i32>} : memref<1x64xf32, #tpu.memory_space<vmem>>, vector<1x64xf32>,
    return
  }
  func.func @transform_0(%arg0: i32) -> (i32, i32) {
    %c0_i32 = arith.constant 0 : i32
    %c0_i32_0 = arith.constant 0 : i32
    return %arg0, %c0_i32 : i32, i32
  }
  func.func @transform_1(%arg0: i32) -> (i32, i32) {
    %c0_i32 = arith.constant 0 : i32
    %c0_i32_0 = arith.constant 0 : i32
    %c0_i32_1 = arith.constant 0 : i32
    return %c0_i32, %c0_i32_0 : i32, i32
  }
  func.func @transform_2(%arg0: i32) -> (i32, i32) {
    %c0_i32 = arith.constant 0 : i32
    %c0_i32_0 = arith.constant 0 : i32
    %c0_i32_1 = arith.constant 0 : i32
    return %c0_i32, %c0_i32_0 : i32, i32
  }
  func.func @transform_3(%arg0: i32) -> (i32, i32) {
    %c0_i32 = arith.constant 0 : i32
    %c0_i32_0 = arith.constant 0 : i32
    %c0_i32_1 = arith.constant 0 : i32
    return %c0_i32, %c0_i32_0 : i32, i32
  }
  func.func @transform_4(%arg0: i32) -> (i32, i32) {
    %c0_i32 = arith.constant 0 : i32
    %c0_i32_0 = arith.constant 0 : i32
    %c0_i32_1 = arith.constant 0 : i32
    return %c0_i32, %c0_i32_0 : i32, i32
  }
  func.func @transform_5(%arg0: i32) -> (i32, i32) {
    %c0_i32 = arith.constant 0 : i32
    %c0_i32_0 = arith.constant 0 : i32
    %c0_i32_1 = arith.constant 0 : i32
    return %c0_i32, %c0_i32_0 : i32, i32
  }
  func.func @transform_6(%arg0: i32) -> (i32, i32) {
    %c0_i32 = arith.constant 0 : i32
    %c0_i32_0 = arith.constant 0 : i32
    %c0_i32_1 = arith.constant 0 : i32
    return %c0_i32, %c0_i32_0 : i32, i32
  }
  func.func @transform_7(%arg0: i32) -> (i32, i32) {
    %c0_i32 = arith.constant 0 : i32
    %c0_i32_0 = arith.constant 0 : i32
    return %arg0, %c0_i32 : i32, i32
  }
}

</mosaic_0001>

<llo_original>
// kernel: tpu_custom_call.1
$region0: #{tpu_custom_call.1}
  #allocation0 [shape = 'u32[]', space=smem, size = 0x4, offset = 0x4, fixed_abs, tag = 'smem constant byte address 0x4 - core index']
  #allocation1 [shape = 'u32[72,128]{1,0:T(1,128)}', space=vmem, size = 0x9000, scoped, tag = 'internal scratch']
  %s0 = inlined_call_operand.vmem [shape: f32[1,128], index: 0, kind: input, shape index: {}]
  %s1 = inlined_call_operand.vmem [shape: f32[128,384], index: 1, kind: input, shape index: {}]
  %s2 = inlined_call_operand.vmem [shape: f32[1,384], index: 2, kind: input, shape index: {}]
  %s3 = inlined_call_operand.hbm [shape: f32[384,384], index: 3, kind: input, shape index: {}]
  %s4 = inlined_call_operand.vmem [shape: f32[1,384], index: 4, kind: input, shape index: {}]
  %s5 = inlined_call_operand.vmem [shape: f32[384,64], index: 5, kind: input, shape index: {}]
  %s6 = inlined_call_operand.vmem [shape: f32[1,64], index: 6, kind: input, shape index: {}]
  %s7 = inlined_call_operand.hbm [shape: f32[1,64], index: 7, kind: output, shape index: {}]
  %s8 = sld [smem:[#allocation0]]
  $region42: #{tpu_custom_call.1} parent=0
    _
  %s10 = ssub.s32 1, %s8
  %s11 = scalar_select 0, %s10, %s8
  $region1: #{tpu_custom_call.1} parent=0
    #allocation2 [shape = 'u8[589824]{0}', space=vmem, size = 0x90000, scoped, tag = 'input window, operand 3, single buffered']
    #allocation3 [shape = 's32[1]{0}', space=sflag, size = 0x4, scoped, tag = 'scoped memory for tpu_custom_call.1']
    #allocation4 [shape = 's32[1]{0}', space=sflag, size = 0x4, scoped, tag = 'scoped memory for tpu_custom_call.1']
    #allocation5 [shape = 'u8[512]{0}', space=vmem, size = 0x400, scoped, tag = 'output window, operand 0, single buffered']
    %12 = vsyncpa [#allocation3], 0
    %13 = vsyncpa [#allocation4], 0
    // Predicated region
    $region2: #{tpu_custom_call.1} parent=1 // pred_check
      _
    $region3: #{tpu_custom_call.1} parent=1 // pred_check_branch
      %15 = sbr.rel (0) target = $region5
    $region4: #{tpu_custom_call.1} parent=1 // pred_region
      _
    $region5: #{tpu_custom_call.1} parent=1 // pred_fallthru
      _
    // Predicated region
    $region6: #{tpu_custom_call.1} parent=1 // pred_check
      _
    $region7: #{tpu_custom_call.1} parent=1 // pred_check_branch
      %17 = sbr.rel (0) target = $region9
    $region8: #{tpu_custom_call.1} parent=1 // pred_region
      _
    $region9: #{tpu_custom_call.1} parent=1 // pred_fallthru
      _
    // Predicated region
    $region10: #{tpu_custom_call.1} parent=1 // pred_check
      _
    $region11: #{tpu_custom_call.1} parent=1 // pred_check_branch
      %19 = sbr.rel (0) target = $region13
    $region12: #{tpu_custom_call.1} parent=1 // pred_region
      _
    $region13: #{tpu_custom_call.1} parent=1 // pred_fallthru
      _
    // Predicated region
    $region14: #{tpu_custom_call.1} parent=1 // pred_check
      _
    $region15: #{tpu_custom_call.1} parent=1 // pred_check_branch
      %21 = sbr.rel (0) target = $region17
    $region16: #{tpu_custom_call.1} parent=1 // pred_region
      %23 = vsyncadd [#allocation3], 0
      %s24 = sshll.u32 %s3, 4
      %s25 = int_to_ptr.hbm [resolvable:$true] %s24
      %s26 = sshll.u32 [#allocation2], 4
      %s27 = int_to_ptr.vmem [resolvable:$true] %s26
      %32 = dma.hbm_to_vmem [thread:$0]  %s25, 18432, %s27, [#allocation3], 384, 384, 24
    $region17: #{tpu_custom_call.1} parent=1 // pred_fallthru
      _
    // Predicated region
    $region18: #{tpu_custom_call.1} parent=1 // pred_check
      _
    $region19: #{tpu_custom_call.1} parent=1 // pred_check_branch
      %34 = sbr.rel (0) target = $region21
    $region20: #{tpu_custom_call.1} parent=1 // pred_region
      _
    $region21: #{tpu_custom_call.1} parent=1 // pred_fallthru
      _
    // Predicated region
    $region22: #{tpu_custom_call.1} parent=1 // pred_check
      _
    $region23: #{tpu_custom_call.1} parent=1 // pred_check_branch
      %36 = sbr.rel (0) target = $region25
    $region24: #{tpu_custom_call.1} parent=1 // pred_region
      _
    $region25: #{tpu_custom_call.1} parent=1 // pred_fallthru
      _
    // Predicated region
    $region26: #{tpu_custom_call.1} parent=1 // pred_check
      _
    $region27: #{tpu_custom_call.1} parent=1 // pred_check_branch
      %38 = sbr.rel (0) target = $region29
    $region28: #{tpu_custom_call.1} parent=1 // pred_region
      _
    $region29: #{tpu_custom_call.1} parent=1 // pred_fallthru
      _
    // Predicated region
    $region30: #{tpu_custom_call.1} parent=1 // pred_check
      _
    $region31: #{tpu_custom_call.1} parent=1 // pred_check_branch
      %40 = sbr.rel (0) target = $region33
    $region32: #{tpu_custom_call.1} parent=1 // pred_region
      %42 = dma.done [#allocation3], 18432
    $region33: #{tpu_custom_call.1} parent=1 // pred_fallthru
      _
    %v43 = vld [vmem:[%s0] sm:$0x1]
    %v44 = vld [vmem:[%s1] sm:$0xff]
    %v45 = vld [vmem:[%s1 + $0x8] sm:$0xff]
    %v46 = vld [vmem:[%s1 + $0x10] sm:$0xff]
    %v47 = vld [vmem:[%s1 + $0x18] sm:$0xff]
    %v48 = vld [vmem:[%s1 + $0x20] sm:$0xff]
    %v49 = vld [vmem:[%s1 + $0x28] sm:$0xff]
    %v50 = vld [vmem:[%s1 + $0x30] sm:$0xff]
    %v51 = vld [vmem:[%s1 + $0x38] sm:$0xff]
    %v52 = vld [vmem:[%s1 + $0x40] sm:$0xff]
    %v53 = vld [vmem:[%s1 + $0x48] sm:$0xff]
    %v54 = vld [vmem:[%s1 + $0x50] sm:$0xff]
    %v55 = vld [vmem:[%s1 + $0x58] sm:$0xff]
    %v56 = vld [vmem:[%s1 + $0x60] sm:$0xff]
    %v57 = vld [vmem:[%s1 + $0x68] sm:$0xff]
    %v58 = vld [vmem:[%s1 + $0x70] sm:$0xff]
    %v59 = vld [vmem:[%s1 + $0x78] sm:$0xff]
    %v60 = vld [vmem:[%s1 + $0x80] sm:$0xff]
    %v61 = vld [vmem:[%s1 + $0x88] sm:$0xff]
    %v62 = vld [vmem:[%s1 + $0x90] sm:$0xff]
    %v63 = vld [vmem:[%s1 + $0x98] sm:$0xff]
    %v64 = vld [vmem:[%s1 + $0xa0] sm:$0xff]
    %v65 = vld [vmem:[%s1 + $0xa8] sm:$0xff]
    %v66 = vld [vmem:[%s1 + $0xb0] sm:$0xff]
    %v67 = vld [vmem:[%s1 + $0xb8] sm:$0xff]
    %v68 = vld [vmem:[%s1 + $0xc0] sm:$0xff]
    %v69 = vld [vmem:[%s1 + $0xc8] sm:$0xff]
    %v70 = vld [vmem:[%s1 + $0xd0] sm:$0xff]
    %v71 = vld [vmem:[%s1 + $0xd8] sm:$0xff]
    %v72 = vld [vmem:[%s1 + $0xe0] sm:$0xff]
    %v73 = vld [vmem:[%s1 + $0xe8] sm:$0xff]
    %v74 = vld [vmem:[%s1 + $0xf0] sm:$0xff]
    %v75 = vld [vmem:[%s1 + $0xf8] sm:$0xff]
    %v76 = vld [vmem:[%s1 + $0x100] sm:$0xff]
    %v77 = vld [vmem:[%s1 + $0x108] sm:$0xff]
    %v78 = vld [vmem:[%s1 + $0x110] sm:$0xff]
    %v79 = vld [vmem:[%s1 + $0x118] sm:$0xff]
    %v80 = vld [vmem:[%s1 + $0x120] sm:$0xff]
    %v81 = vld [vmem:[%s1 + $0x128] sm:$0xff]
    %v82 = vld [vmem:[%s1 + $0x130] sm:$0xff]
    %v83 = vld [vmem:[%s1 + $0x138] sm:$0xff]
    %v84 = vld [vmem:[%s1 + $0x140] sm:$0xff]
    %v85 = vld [vmem:[%s1 + $0x148] sm:$0xff]
    %v86 = vld [vmem:[%s1 + $0x150] sm:$0xff]
    %v87 = vld [vmem:[%s1 + $0x158] sm:$0xff]
    %v88 = vld [vmem:[%s1 + $0x160] sm:$0xff]
    %v89 = vld [vmem:[%s1 + $0x168] sm:$0xff]
    %v90 = vld [vmem:[%s1 + $0x170] sm:$0xff]
    %v91 = vld [vmem:[%s1 + $0x178] sm:$0xff]
    %v92 = vld [vmem:[%s2] sm:$0x7]
    %v94 = vperm.slane %v92, 0
    %v95 = vperm.slane %v92, 1
    %v96 = vperm.slane %v92, 2
    %100 = vmatpush.msra.mxu0 %v89
    %101 = vmatpush.msra.mxu0 %v86
    %102 = vmatpush.msra.mxu0 %v83
    %103 = vmatpush.msra.mxu0 %v80
    %104 = vmatpush.msra.mxu0 %v77
    %105 = vmatpush.msra.mxu0 %v74
    %106 = vmatpush.msra.mxu0 %v71
    %107 = vmatpush.msra.mxu0 %v68
    %108 = vmatpush.msra.mxu0 %v65
    %109 = vmatpush.msra.mxu0 %v62
    %110 = vmatpush.msra.mxu0 %v59
    %111 = vmatpush.msra.mxu0 %v56
    %112 = vmatpush.msra.mxu0 %v53
    %113 = vmatpush.msra.mxu0 %v50
    %114 = vmatpush.msra.mxu0 %v47
    %115 = vmatpush.msra.mxu0 %v44
    %116 = vmatmul.f32.gmra.mxu0 %v43
    %v117 = vpop.f32.mrf.mxu0
    %v118 = vadd.f32 %v94, %v117
    %119 = vdwg.mxu0
    %120 = vmatpush.msra.mxu0 %v90
    %121 = vmatpush.msra.mxu0 %v87
    %122 = vmatpush.msra.mxu0 %v84
    %123 = vmatpush.msra.mxu0 %v81
    %124 = vmatpush.msra.mxu0 %v78
    %125 = vmatpush.msra.mxu0 %v75
    %126 = vmatpush.msra.mxu0 %v72
    %127 = vmatpush.msra.mxu0 %v69
    %128 = vmatpush.msra.mxu0 %v66
    %129 = vmatpush.msra.mxu0 %v63
    %130 = vmatpush.msra.mxu0 %v60
    %131 = vmatpush.msra.mxu0 %v57
    %132 = vmatpush.msra.mxu0 %v54
    %133 = vmatpush.msra.mxu0 %v51
    %134 = vmatpush.msra.mxu0 %v48
    %135 = vmatpush.msra.mxu0 %v45
    %136 = vmatmul.f32.gmra.mxu0 %v43
    %v137 = vpop.f32.mrf.mxu0
    %v138 = vadd.f32 %v95, %v137
    %139 = vdwg.mxu0
    %140 = vmatpush.msra.mxu0 %v91
    %141 = vmatpush.msra.mxu0 %v88
    %142 = vmatpush.msra.mxu0 %v85
    %143 = vmatpush.msra.mxu0 %v82
    %144 = vmatpush.msra.mxu0 %v79
    %145 = vmatpush.msra.mxu0 %v76
    %146 = vmatpush.msra.mxu0 %v73
    %147 = vmatpush.msra.mxu0 %v70
    %148 = vmatpush.msra.mxu0 %v67
    %149 = vmatpush.msra.mxu0 %v64
    %150 = vmatpush.msra.mxu0 %v61
    %151 = vmatpush.msra.mxu0 %v58
    %152 = vmatpush.msra.mxu0 %v55
    %153 = vmatpush.msra.mxu0 %v52
    %154 = vmatpush.msra.mxu0 %v49
    %155 = vmatpush.msra.mxu0 %v46
    %156 = vmatmul.f32.gmra.mxu0 %v43
    %v157 = vpop.f32.mrf.mxu0
    %v158 = vadd.f32 %v96, %v157
    %159 = vdwg.mxu0
    %vm160 = vcmp.gt.f32.partialorder %v118, 0.0
    %vm161 = vcmp.gt.f32.partialorder %v138, 0.0
    %vm162 = vcmp.gt.f32.partialorder %v158, 0.0
    %v163 = vmul.f32 %v118, 0.01
    %v164 = vmul.f32 %v138, 0.01
    %v165 = vmul.f32 %v158, 0.01
    %v166 = vsel %vm160, %v118, %v163
    %v167 = vsel %vm161, %v138, %v164
    %v168 = vsel %vm162, %v158, %v165
    %v169 = vld [vmem:[#allocation2] sm:$0xff]
    %v170 = vld [vmem:[#allocation2 + $0x8] sm:$0xff]
    %v171 = vld [vmem:[#allocation2 + $0x10] sm:$0xff]
    %v172 = vld [vmem:[#allocation2 + $0x18] sm:$0xff]
    %v173 = vld [vmem:[#allocation2 + $0x20] sm:$0xff]
    %v174 = vld [vmem:[#allocation2 + $0x28] sm:$0xff]
    %v175 = vld [vmem:[#allocation2 + $0x30] sm:$0xff]
    %v176 = vld [vmem:[#allocation2 + $0x38] sm:$0xff]
    %v177 = vld [vmem:[#allocation2 + $0x40] sm:$0xff]
    %v178 = vld [vmem:[#allocation2 + $0x48] sm:$0xff]
    %v179 = vld [vmem:[#allocation2 + $0x50] sm:$0xff]
    %v180 = vld [vmem:[#allocation2 + $0x58] sm:$0xff]
    %v181 = vld [vmem:[#allocation2 + $0x60] sm:$0xff]
    %v182 = vld [vmem:[#allocation2 + $0x68] sm:$0xff]
    %v183 = vld [vmem:[#allocation2 + $0x70] sm:$0xff]
    %v184 = vld [vmem:[#allocation2 + $0x78] sm:$0xff]
    %v185 = vld [vmem:[#allocation2 + $0x80] sm:$0xff]
    %v186 = vld [vmem:[#allocation2 + $0x88] sm:$0xff]
    %v187 = vld [vmem:[#allocation2 + $0x90] sm:$0xff]
    %v188 = vld [vmem:[#allocation2 + $0x98] sm:$0xff]
    %v189 = vld [vmem:[#allocation2 + $0xa0] sm:$0xff]
    %v190 = vld [vmem:[#allocation2 + $0xa8] sm:$0xff]
    %v191 = vld [vmem:[#allocation2 + $0xb0] sm:$0xff]
    %v192 = vld [vmem:[#allocation2 + $0xb8] sm:$0xff]
    %v193 = vld [vmem:[#allocation2 + $0xc0] sm:$0xff]
    %v194 = vld [vmem:[#allocation2 + $0xc8] sm:$0xff]
    %v195 = vld [vmem:[#allocation2 + $0xd0] sm:$0xff]
    %v196 = vld [vmem:[#allocation2 + $0xd8] sm:$0xff]
    %v197 = vld [vmem:[#allocation2 + $0xe0] sm:$0xff]
    %v198 = vld [vmem:[#allocation2 + $0xe8] sm:$0xff]
    %v199 = vld [vmem:[#allocation2 + $0xf0] sm:$0xff]
    %v200 = vld [vmem:[#allocation2 + $0xf8] sm:$0xff]
    %v201 = vld [vmem:[#allocation2 + $0x100] sm:$0xff]
    %v202 = vld [vmem:[#allocation2 + $0x108] sm:$0xff]
    %v203 = vld [vmem:[#allocation2 + $0x110] sm:$0xff]
    %v204 = vld [vmem:[#allocation2 + $0x118] sm:$0xff]
    %v205 = vld [vmem:[#allocation2 + $0x120] sm:$0xff]
    %v206 = vld [vmem:[#allocation2 + $0x128] sm:$0xff]
    %v207 = vld [vmem:[#allocation2 + $0x130] sm:$0xff]
    %v208 = vld [vmem:[#allocation2 + $0x138] sm:$0xff]
    %v209 = vld [vmem:[#allocation2 + $0x140] sm:$0xff]
    %v210 = vld [vmem:[#allocation2 + $0x148] sm:$0xff]
    %v211 = vld [vmem:[#allocation2 + $0x150] sm:$0xff]
    %v212 = vld [vmem:[#allocation2 + $0x158] sm:$0xff]
    %v213 = vld [vmem:[#allocation2 + $0x160] sm:$0xff]
    %v214 = vld [vmem:[#allocation2 + $0x168] sm:$0xff]
    %v215 = vld [vmem:[#allocation2 + $0x170] sm:$0xff]
    %v216 = vld [vmem:[#allocation2 + $0x178] sm:$0xff]
    %v217 = vld [vmem:[#allocation2 + $0x180] sm:$0xff]
    %v218 = vld [vmem:[#allocation2 + $0x188] sm:$0xff]
    %v219 = vld [vmem:[#allocation2 + $0x190] sm:$0xff]
    %v220 = vld [vmem:[#allocation2 + $0x198] sm:$0xff]
    %v221 = vld [vmem:[#allocation2 + $0x1a0] sm:$0xff]
    %v222 = vld [vmem:[#allocation2 + $0x1a8] sm:$0xff]
    %v223 = vld [vmem:[#allocation2 + $0x1b0] sm:$0xff]
    %v224 = vld [vmem:[#allocation2 + $0x1b8] sm:$0xff]
    %v225 = vld [vmem:[#allocation2 + $0x1c0] sm:$0xff]
    %v226 = vld [vmem:[#allocation2 + $0x1c8] sm:$0xff]
    %v227 = vld [vmem:[#allocation2 + $0x1d0] sm:$0xff]
    %v228 = vld [vmem:[#allocation2 + $0x1d8] sm:$0xff]
    %v229 = vld [vmem:[#allocation2 + $0x1e0] sm:$0xff]
    %v230 = vld [vmem:[#allocation2 + $0x1e8] sm:$0xff]
    %v231 = vld [vmem:[#allocation2 + $0x1f0] sm:$0xff]
    %v232 = vld [vmem:[#allocation2 + $0x1f8] sm:$0xff]
    %v233 = vld [vmem:[#allocation2 + $0x200] sm:$0xff]
    %v234 = vld [vmem:[#allocation2 + $0x208] sm:$0xff]
    %v235 = vld [vmem:[#allocation2 + $0x210] sm:$0xff]
    %v236 = vld [vmem:[#allocation2 + $0x218] sm:$0xff]
    %v237 = vld [vmem:[#allocation2 + $0x220] sm:$0xff]
    %v238 = vld [vmem:[#allocation2 + $0x228] sm:$0xff]
    %v239 = vld [vmem:[#allocation2 + $0x230] sm:$0xff]
    %v240 = vld [vmem:[#allocation2 + $0x238] sm:$0xff]
    %v241 = vld [vmem:[#allocation2 + $0x240] sm:$0xff]
    %v242 = vld [vmem:[#allocation2 + $0x248] sm:$0xff]
    %v243 = vld [vmem:[#allocation2 + $0x250] sm:$0xff]
    %v244 = vld [vmem:[#allocation2 + $0x258] sm:$0xff]
    %v245 = vld [vmem:[#allocation2 + $0x260] sm:$0xff]
    %v246 = vld [vmem:[#allocation2 + $0x268] sm:$0xff]
    %v247 = vld [vmem:[#allocation2 + $0x270] sm:$0xff]
    %v248 = vld [vmem:[#allocation2 + $0x278] sm:$0xff]
    %v249 = vld [vmem:[#allocation2 + $0x280] sm:$0xff]
    %v250 = vld [vmem:[#allocation2 + $0x288] sm:$0xff]
    %v251 = vld [vmem:[#allocation2 + $0x290] sm:$0xff]
    %v252 = vld [vmem:[#allocation2 + $0x298] sm:$0xff]
    %v253 = vld [vmem:[#allocation2 + $0x2a0] sm:$0xff]
    %v254 = vld [vmem:[#allocation2 + $0x2a8] sm:$0xff]
    %v255 = vld [vmem:[#allocation2 + $0x2b0] sm:$0xff]
    %v256 = vld [vmem:[#allocation2 + $0x2b8] sm:$0xff]
    %v257 = vld [vmem:[#allocation2 + $0x2c0] sm:$0xff]
    %v258 = vld [vmem:[#allocation2 + $0x2c8] sm:$0xff]
    %v259 = vld [vmem:[#allocation2 + $0x2d0] sm:$0xff]
    %v260 = vld [vmem:[#allocation2 + $0x2d8] sm:$0xff]
    %v261 = vld [vmem:[#allocation2 + $0x2e0] sm:$0xff]
    %v262 = vld [vmem:[#allocation2 + $0x2e8] sm:$0xff]
    %v263 = vld [vmem:[#allocation2 + $0x2f0] sm:$0xff]
    %v264 = vld [vmem:[#allocation2 + $0x2f8] sm:$0xff]
    %v265 = vld [vmem:[#allocation2 + $0x300] sm:$0xff]
    %v266 = vld [vmem:[#allocation2 + $0x308] sm:$0xff]
    %v267 = vld [vmem:[#allocation2 + $0x310] sm:$0xff]
    %v268 = vld [vmem:[#allocation2 + $0x318] sm:$0xff]
    %v269 = vld [vmem:[#allocation2 + $0x320] sm:$0xff]
    %v270 = vld [vmem:[#allocation2 + $0x328] sm:$0xff]
    %v271 = vld [vmem:[#allocation2 + $0x330] sm:$0xff]
    %v272 = vld [vmem:[#allocation2 + $0x338] sm:$0xff]
    %v273 = vld [vmem:[#allocation2 + $0x340] sm:$0xff]
    %v274 = vld [vmem:[#allocation2 + $0x348] sm:$0xff]
    %v275 = vld [vmem:[#allocation2 + $0x350] sm:$0xff]
    %v276 = vld [vmem:[#allocation2 + $0x358] sm:$0xff]
    %v277 = vld [vmem:[#allocation2 + $0x360] sm:$0xff]
    %v278 = vld [vmem:[#allocation2 + $0x368] sm:$0xff]
    %v279 = vld [vmem:[#allocation2 + $0x370] sm:$0xff]
    %v280 = vld [vmem:[#allocation2 + $0x378] sm:$0xff]
    %v281 = vld [vmem:[#allocation2 + $0x380] sm:$0xff]
    %v282 = vld [vmem:[#allocation2 + $0x388] sm:$0xff]
    %v283 = vld [vmem:[#allocation2 + $0x390] sm:$0xff]
    %v284 = vld [vmem:[#allocation2 + $0x398] sm:$0xff]
    %v285 = vld [vmem:[#allocation2 + $0x3a0] sm:$0xff]
    %v286 = vld [vmem:[#allocation2 + $0x3a8] sm:$0xff]
    %v287 = vld [vmem:[#allocation2 + $0x3b0] sm:$0xff]
    %v288 = vld [vmem:[#allocation2 + $0x3b8] sm:$0xff]
    %v289 = vld [vmem:[#allocation2 + $0x3c0] sm:$0xff]
    %v290 = vld [vmem:[#allocation2 + $0x3c8] sm:$0xff]
    %v291 = vld [vmem:[#allocation2 + $0x3d0] sm:$0xff]
    %v292 = vld [vmem:[#allocation2 + $0x3d8] sm:$0xff]
    %v293 = vld [vmem:[#allocation2 + $0x3e0] sm:$0xff]
    %v294 = vld [vmem:[#allocation2 + $0x3e8] sm:$0xff]
    %v295 = vld [vmem:[#allocation2 + $0x3f0] sm:$0xff]
    %v296 = vld [vmem:[#allocation2 + $0x3f8] sm:$0xff]
    %v297 = vld [vmem:[#allocation2 + $0x400] sm:$0xff]
    %v298 = vld [vmem:[#allocation2 + $0x408] sm:$0xff]
    %v299 = vld [vmem:[#allocation2 + $0x410] sm:$0xff]
    %v300 = vld [vmem:[#allocation2 + $0x418] sm:$0xff]
    %v301 = vld [vmem:[#allocation2 + $0x420] sm:$0xff]
    %v302 = vld [vmem:[#allocation2 + $0x428] sm:$0xff]
    %v303 = vld [vmem:[#allocation2 + $0x430] sm:$0xff]
    %v304 = vld [vmem:[#allocation2 + $0x438] sm:$0xff]
    %v305 = vld [vmem:[#allocation2 + $0x440] sm:$0xff]
    %v306 = vld [vmem:[#allocation2 + $0x448] sm:$0xff]
    %v307 = vld [vmem:[#allocation2 + $0x450] sm:$0xff]
    %v308 = vld [vmem:[#allocation2 + $0x458] sm:$0xff]
    %v309 = vld [vmem:[#allocation2 + $0x460] sm:$0xff]
    %v310 = vld [vmem:[#allocation2 + $0x468] sm:$0xff]
    %v311 = vld [vmem:[#allocation2 + $0x470] sm:$0xff]
    %v312 = vld [vmem:[#allocation2 + $0x478] sm:$0xff]
    %v313 = vld [vmem:[%s4] sm:$0x7]
    %v315 = vperm.slane %v313, 0
    %v316 = vperm.slane %v313, 1
    %v317 = vperm.slane %v313, 2
    %321 = vmatpush.msra.mxu0 %v214
    %322 = vmatpush.msra.mxu0 %v211
    %323 = vmatpush.msra.mxu0 %v208
    %324 = vmatpush.msra.mxu0 %v205
    %325 = vmatpush.msra.mxu0 %v202
    %326 = vmatpush.msra.mxu0 %v199
    %327 = vmatpush.msra.mxu0 %v196
    %328 = vmatpush.msra.mxu0 %v193
    %329 = vmatpush.msra.mxu0 %v190
    %330 = vmatpush.msra.mxu0 %v187
    %331 = vmatpush.msra.mxu0 %v184
    %332 = vmatpush.msra.mxu0 %v181
    %333 = vmatpush.msra.mxu0 %v178
    %334 = vmatpush.msra.mxu0 %v175
    %335 = vmatpush.msra.mxu0 %v172
    %336 = vmatpush.msra.mxu0 %v169
    %337 = vmatmul.f32.gmra.mxu0 %v166
    %v338 = vpop.f32.mrf.mxu0
    %v339 = vadd.f32 %v315, %v338
    %340 = vdwg.mxu0
    %341 = vmatpush.msra.mxu0 %v262
    %342 = vmatpush.msra.mxu0 %v259
    %343 = vmatpush.msra.mxu0 %v256
    %344 = vmatpush.msra.mxu0 %v253
    %345 = vmatpush.msra.mxu0 %v250
    %346 = vmatpush.msra.mxu0 %v247
    %347 = vmatpush.msra.mxu0 %v244
    %348 = vmatpush.msra.mxu0 %v241
    %349 = vmatpush.msra.mxu0 %v238
    %350 = vmatpush.msra.mxu0 %v235
    %351 = vmatpush.msra.mxu0 %v232
    %352 = vmatpush.msra.mxu0 %v229
    %353 = vmatpush.msra.mxu0 %v226
    %354 = vmatpush.msra.mxu0 %v223
    %355 = vmatpush.msra.mxu0 %v220
    %356 = vmatpush.msra.mxu0 %v217
    %357 = vmatmul.f32.gmra.mxu0 %v167
    %v358 = vpop.f32.mrf.mxu0
    %v359 = vadd.f32 %v339, %v358
    %360 = vdwg.mxu0
    %361 = vmatpush.msra.mxu0 %v310
    %362 = vmatpush.msra.mxu0 %v307
    %363 = vmatpush.msra.mxu0 %v304
    %364 = vmatpush.msra.mxu0 %v301
    %365 = vmatpush.msra.mxu0 %v298
    %366 = vmatpush.msra.mxu0 %v295
    %367 = vmatpush.msra.mxu0 %v292
    %368 = vmatpush.msra.mxu0 %v289
    %369 = vmatpush.msra.mxu0 %v286
    %370 = vmatpush.msra.mxu0 %v283
    %371 = vmatpush.msra.mxu0 %v280
    %372 = vmatpush.msra.mxu0 %v277
    %373 = vmatpush.msra.mxu0 %v274
    %374 = vmatpush.msra.mxu0 %v271
    %375 = vmatpush.msra.mxu0 %v268
    %376 = vmatpush.msra.mxu0 %v265
    %377 = vmatmul.f32.gmra.mxu0 %v168
    %v378 = vpop.f32.mrf.mxu0
    %v379 = vadd.f32 %v359, %v378
    %380 = vdwg.mxu0
    %381 = vmatpush.msra.mxu0 %v215
    %382 = vmatpush.msra.mxu0 %v212
    %383 = vmatpush.msra.mxu0 %v209
    %384 = vmatpush.msra.mxu0 %v206
    %385 = vmatpush.msra.mxu0 %v203
    %386 = vmatpush.msra.mxu0 %v200
    %387 = vmatpush.msra.mxu0 %v197
    %388 = vmatpush.msra.mxu0 %v194
    %389 = vmatpush.msra.mxu0 %v191
    %390 = vmatpush.msra.mxu0 %v188
    %391 = vmatpush.msra.mxu0 %v185
    %392 = vmatpush.msra.mxu0 %v182
    %393 = vmatpush.msra.mxu0 %v179
    %394 = vmatpush.msra.mxu0 %v176
    %395 = vmatpush.msra.mxu0 %v173
    %396 = vmatpush.msra.mxu0 %v170
    %397 = vmatmul.f32.gmra.mxu0 %v166
    %v398 = vpop.f32.mrf.mxu0
    %v399 = vadd.f32 %v316, %v398
    %400 = vdwg.mxu0
    %401 = vmatpush.msra.mxu0 %v263
    %402 = vmatpush.msra.mxu0 %v260
    %403 = vmatpush.msra.mxu0 %v257
    %404 = vmatpush.msra.mxu0 %v254
    %405 = vmatpush.msra.mxu0 %v251
    %406 = vmatpush.msra.mxu0 %v248
    %407 = vmatpush.msra.mxu0 %v245
    %408 = vmatpush.msra.mxu0 %v242
    %409 = vmatpush.msra.mxu0 %v239
    %410 = vmatpush.msra.mxu0 %v236
    %411 = vmatpush.msra.mxu0 %v233
    %412 = vmatpush.msra.mxu0 %v230
    %413 = vmatpush.msra.mxu0 %v227
    %414 = vmatpush.msra.mxu0 %v224
    %415 = vmatpush.msra.mxu0 %v221
    %416 = vmatpush.msra.mxu0 %v218
    %417 = vmatmul.f32.gmra.mxu0 %v167
    %v418 = vpop.f32.mrf.mxu0
    %v419 = vadd.f32 %v399, %v418
    %420 = vdwg.mxu0
    %421 = vmatpush.msra.mxu0 %v311
    %422 = vmatpush.msra.mxu0 %v308
    %423 = vmatpush.msra.mxu0 %v305
    %424 = vmatpush.msra.mxu0 %v302
    %425 = vmatpush.msra.mxu0 %v299
    %426 = vmatpush.msra.mxu0 %v296
    %427 = vmatpush.msra.mxu0 %v293
    %428 = vmatpush.msra.mxu0 %v290
    %429 = vmatpush.msra.mxu0 %v287
    %430 = vmatpush.msra.mxu0 %v284
    %431 = vmatpush.msra.mxu0 %v281
    %432 = vmatpush.msra.mxu0 %v278
    %433 = vmatpush.msra.mxu0 %v275
    %434 = vmatpush.msra.mxu0 %v272
    %435 = vmatpush.msra.mxu0 %v269
    %436 = vmatpush.msra.mxu0 %v266
    %437 = vmatmul.f32.gmra.mxu0 %v168
    %v438 = vpop.f32.mrf.mxu0
    %v439 = vadd.f32 %v419, %v438
    %440 = vdwg.mxu0
    %441 = vmatpush.msra.mxu0 %v216
    %442 = vmatpush.msra.mxu0 %v213
    %443 = vmatpush.msra.mxu0 %v210
    %444 = vmatpush.msra.mxu0 %v207
    %445 = vmatpush.msra.mxu0 %v204
    %446 = vmatpush.msra.mxu0 %v201
    %447 = vmatpush.msra.mxu0 %v198
    %448 = vmatpush.msra.mxu0 %v195
    %449 = vmatpush.msra.mxu0 %v192
    %450 = vmatpush.msra.mxu0 %v189
    %451 = vmatpush.msra.mxu0 %v186
    %452 = vmatpush.msra.mxu0 %v183
    %453 = vmatpush.msra.mxu0 %v180
    %454 = vmatpush.msra.mxu0 %v177
    %455 = vmatpush.msra.mxu0 %v174
    %456 = vmatpush.msra.mxu0 %v171
    %457 = vmatmul.f32.gmra.mxu0 %v166
    %v458 = vpop.f32.mrf.mxu0
    %v459 = vadd.f32 %v317, %v458
    %460 = vdwg.mxu0
    %461 = vmatpush.msra.mxu0 %v264
    %462 = vmatpush.msra.mxu0 %v261
    %463 = vmatpush.msra.mxu0 %v258
    %464 = vmatpush.msra.mxu0 %v255
    %465 = vmatpush.msra.mxu0 %v252
    %466 = vmatpush.msra.mxu0 %v249
    %467 = vmatpush.msra.mxu0 %v246
    %468 = vmatpush.msra.mxu0 %v243
    %469 = vmatpush.msra.mxu0 %v240
    %470 = vmatpush.msra.mxu0 %v237
    %471 = vmatpush.msra.mxu0 %v234
    %472 = vmatpush.msra.mxu0 %v231
    %473 = vmatpush.msra.mxu0 %v228
    %474 = vmatpush.msra.mxu0 %v225
    %475 = vmatpush.msra.mxu0 %v222
    %476 = vmatpush.msra.mxu0 %v219
    %477 = vmatmul.f32.gmra.mxu0 %v167
    %v478 = vpop.f32.mrf.mxu0
    %v479 = vadd.f32 %v459, %v478
    %480 = vdwg.mxu0
    %481 = vmatpush.msra.mxu0 %v312
    %482 = vmatpush.msra.mxu0 %v309
    %483 = vmatpush.msra.mxu0 %v306
    %484 = vmatpush.msra.mxu0 %v303
    %485 = vmatpush.msra.mxu0 %v300
    %486 = vmatpush.msra.mxu0 %v297
    %487 = vmatpush.msra.mxu0 %v294
    %488 = vmatpush.msra.mxu0 %v291
    %489 = vmatpush.msra.mxu0 %v288
    %490 = vmatpush.msra.mxu0 %v285
    %491 = vmatpush.msra.mxu0 %v282
    %492 = vmatpush.msra.mxu0 %v279
    %493 = vmatpush.msra.mxu0 %v276
    %494 = vmatpush.msra.mxu0 %v273
    %495 = vmatpush.msra.mxu0 %v270
    %496 = vmatpush.msra.mxu0 %v267
    %497 = vmatmul.f32.gmra.mxu0 %v168
    %v498 = vpop.f32.mrf.mxu0
    %v499 = vadd.f32 %v479, %v498
    %500 = vdwg.mxu0
    %vm501 = vcmp.gt.f32.partialorder %v379, 0.0
    %vm502 = vcmp.gt.f32.partialorder %v439, 0.0
    %vm503 = vcmp.gt.f32.partialorder %v499, 0.0
    %v504 = vmul.f32 %v379, 0.01
    %v505 = vmul.f32 %v439, 0.01
    %v506 = vmul.f32 %v499, 0.01
    %v507 = vsel %vm501, %v379, %v504
    %v508 = vsel %vm502, %v439, %v505
    %v509 = vsel %vm503, %v499, %v506
    %v510 = vld [vmem:[%s5] sm:$0xff]
    %v511 = vld [vmem:[%s5 + $0x8] sm:$0xff]
    %v512 = vld [vmem:[%s5 + $0x10] sm:$0xff]
    %v513 = vld [vmem:[%s5 + $0x18] sm:$0xff]
    %v514 = vld [vmem:[%s5 + $0x20] sm:$0xff]
    %v515 = vld [vmem:[%s5 + $0x28] sm:$0xff]
    %v516 = vld [vmem:[%s5 + $0x30] sm:$0xff]
    %v517 = vld [vmem:[%s5 + $0x38] sm:$0xff]
    %v518 = vld [vmem:[%s5 + $0x40] sm:$0xff]
    %v519 = vld [vmem:[%s5 + $0x48] sm:$0xff]
    %v520 = vld [vmem:[%s5 + $0x50] sm:$0xff]
    %v521 = vld [vmem:[%s5 + $0x58] sm:$0xff]
    %v522 = vld [vmem:[%s5 + $0x60] sm:$0xff]
    %v523 = vld [vmem:[%s5 + $0x68] sm:$0xff]
    %v524 = vld [vmem:[%s5 + $0x70] sm:$0xff]
    %v525 = vld [vmem:[%s5 + $0x78] sm:$0xff]
    %v526 = vld [vmem:[%s5 + $0x80] sm:$0xff]
    %v527 = vld [vmem:[%s5 + $0x88] sm:$0xff]
    %v528 = vld [vmem:[%s5 + $0x90] sm:$0xff]
    %v529 = vld [vmem:[%s5 + $0x98] sm:$0xff]
    %v530 = vld [vmem:[%s5 + $0xa0] sm:$0xff]
    %v531 = vld [vmem:[%s5 + $0xa8] sm:$0xff]
    %v532 = vld [vmem:[%s5 + $0xb0] sm:$0xff]
    %v533 = vld [vmem:[%s5 + $0xb8] sm:$0xff]
    %v534 = vld [vmem:[%s5 + $0xc0] sm:$0xff]
    %v535 = vld [vmem:[%s5 + $0xc8] sm:$0xff]
    %v536 = vld [vmem:[%s5 + $0xd0] sm:$0xff]
    %v537 = vld [vmem:[%s5 + $0xd8] sm:$0xff]
    %v538 = vld [vmem:[%s5 + $0xe0] sm:$0xff]
    %v539 = vld [vmem:[%s5 + $0xe8] sm:$0xff]
    %v540 = vld [vmem:[%s5 + $0xf0] sm:$0xff]
    %v541 = vld [vmem:[%s5 + $0xf8] sm:$0xff]
    %v542 = vld [vmem:[%s5 + $0x100] sm:$0xff]
    %v543 = vld [vmem:[%s5 + $0x108] sm:$0xff]
    %v544 = vld [vmem:[%s5 + $0x110] sm:$0xff]
    %v545 = vld [vmem:[%s5 + $0x118] sm:$0xff]
    %v546 = vld [vmem:[%s5 + $0x120] sm:$0xff]
    %v547 = vld [vmem:[%s5 + $0x128] sm:$0xff]
    %v548 = vld [vmem:[%s5 + $0x130] sm:$0xff]
    %v549 = vld [vmem:[%s5 + $0x138] sm:$0xff]
    %v550 = vld [vmem:[%s5 + $0x140] sm:$0xff]
    %v551 = vld [vmem:[%s5 + $0x148] sm:$0xff]
    %v552 = vld [vmem:[%s5 + $0x150] sm:$0xff]
    %v553 = vld [vmem:[%s5 + $0x158] sm:$0xff]
    %v554 = vld [vmem:[%s5 + $0x160] sm:$0xff]
    %v555 = vld [vmem:[%s5 + $0x168] sm:$0xff]
    %v556 = vld [vmem:[%s5 + $0x170] sm:$0xff]
    %v557 = vld [vmem:[%s5 + $0x178] sm:$0xff]
    %v558 = vld [vmem:[%s6] sm:$0x1]
    %559 = vmatpush.msra.mxu0 %v525
    %560 = vmatpush.msra.mxu0 %v524
    %561 = vmatpush.msra.mxu0 %v523
    %562 = vmatpush.msra.mxu0 %v522
    %563 = vmatpush.msra.mxu0 %v521
    %564 = vmatpush.msra.mxu0 %v520
    %565 = vmatpush.msra.mxu0 %v519
    %566 = vmatpush.msra.mxu0 %v518
    %567 = vmatpush.msra.mxu0 %v517
    %568 = vmatpush.msra.mxu0 %v516
    %569 = vmatpush.msra.mxu0 %v515
    %570 = vmatpush.msra.mxu0 %v514
    %571 = vmatpush.msra.mxu0 %v513
    %572 = vmatpush.msra.mxu0 %v512
    %573 = vmatpush.msra.mxu0 %v511
    %574 = vmatpush.msra.mxu0 %v510
    %575 = vmatmul.f32.gmra.mxu0 %v507
    %v576 = vpop.f32.mrf.mxu0
    %v577 = vadd.f32 %v558, %v576
    %578 = vdwg.mxu0
    %579 = vmatpush.msra.mxu0 %v541
    %580 = vmatpush.msra.mxu0 %v540
    %581 = vmatpush.msra.mxu0 %v539
    %582 = vmatpush.msra.mxu0 %v538
    %583 = vmatpush.msra.mxu0 %v537
    %584 = vmatpush.msra.mxu0 %v536
    %585 = vmatpush.msra.mxu0 %v535
    %586 = vmatpush.msra.mxu0 %v534
    %587 = vmatpush.msra.mxu0 %v533
    %588 = vmatpush.msra.mxu0 %v532
    %589 = vmatpush.msra.mxu0 %v531
    %590 = vmatpush.msra.mxu0 %v530
    %591 = vmatpush.msra.mxu0 %v529
    %592 = vmatpush.msra.mxu0 %v528
    %593 = vmatpush.msra.mxu0 %v527
    %594 = vmatpush.msra.mxu0 %v526
    %595 = vmatmul.f32.gmra.mxu0 %v508
    %v596 = vpop.f32.mrf.mxu0
    %v597 = vadd.f32 %v577, %v596
    %598 = vdwg.mxu0
    %599 = vmatpush.msra.mxu0 %v557
    %600 = vmatpush.msra.mxu0 %v556
    %601 = vmatpush.msra.mxu0 %v555
    %602 = vmatpush.msra.mxu0 %v554
    %603 = vmatpush.msra.mxu0 %v553
    %604 = vmatpush.msra.mxu0 %v552
    %605 = vmatpush.msra.mxu0 %v551
    %606 = vmatpush.msra.mxu0 %v550
    %607 = vmatpush.msra.mxu0 %v549
    %608 = vmatpush.msra.mxu0 %v548
    %609 = vmatpush.msra.mxu0 %v547
    %610 = vmatpush.msra.mxu0 %v546
    %611 = vmatpush.msra.mxu0 %v545
    %612 = vmatpush.msra.mxu0 %v544
    %613 = vmatpush.msra.mxu0 %v543
    %614 = vmatpush.msra.mxu0 %v542
    %615 = vmatmul.f32.gmra.mxu0 %v509
    %v616 = vpop.f32.mrf.mxu0
    %v617 = vadd.f32 %v597, %v616
    %618 = vdwg.mxu0
    %vm619 = vcmask 516096
    %620 = vst.msk [vmem:[#allocation5] sm:$0x1] %vm619, %v617
    // Predicated region
    $region34: #{tpu_custom_call.1} parent=1 // pred_check
      _
    $region35: #{tpu_custom_call.1} parent=1 // pred_check_branch
      %622 = sbr.rel (0) target = $region37
    $region36: #{tpu_custom_call.1} parent=1 // pred_region
      %624 = vsyncadd [#allocation4], 0
      %s626 = sshll.u32 [#allocation5], 4
      %s627 = int_to_ptr.vmem [resolvable:$true] %s626
      %s628 = sshll.u32 %s7, 4
      %s629 = int_to_ptr.hbm [resolvable:$true] %s628
      %631 = dma.vmem_to_hbm [thread:$0]  %s627, 16, %s629, [#allocation4]
    $region37: #{tpu_custom_call.1} parent=1 // pred_fallthru
      _
    // Predicated region
    $region38: #{tpu_custom_call.1} parent=1 // pred_check
      _
    $region39: #{tpu_custom_call.1} parent=1 // pred_check_branch
      %633 = sbr.rel (0) target = $region41
    $region40: #{tpu_custom_call.1} parent=1 // pred_region
      %635 = dma.done [#allocation4], 16
    $region41: #{tpu_custom_call.1} parent=1 // pred_fallthru
      _
    %636 = vsyncpa [#allocation3], 1
    %637 = vsyncpa [#allocation4], 1

</llo_original>
